<compile_context>
chip_gen: v7x
topology: tpu7x:2x2x1
jax: 0.10.0
libtpu: 0.0.40
codegen_flags: <defaults>
</compile_context>

<pallas_src>
import functools

import jax
import jax.numpy as jnp
from jax.experimental import pallas as pl
from jax.experimental.pallas import tpu as pltpu


def _basic_nn_kernel(x_ref, w1_ref, b1_ref, w2_ref, b2_ref, out_ref, *, compute_dtype):
    # ---- Layer 1: x @ W1 + b1, ReLU ------------------------------------------------
    x = x_ref[...].astype(compute_dtype)          # (TILE_B, in)  (bf16 cast is a no-op for f32)
    w1 = w1_ref[...].astype(compute_dtype)        # (in, 20)
    h = jnp.dot(x, w1, preferred_element_type=jnp.float32)   # MXU, f32 accumulate -> (TILE_B, 20)
    h = jnp.maximum(h + b1_ref[...], 0.0)         # f32 VPU bias + ReLU (v5e-safe)

    # ---- Layer 2: produce the result TRANSPOSED (2, TILE_B) for lane-dense stores ---
    # y_t[n, b] = sum_k W2[k, n] * h[b, k]
    w2 = w2_ref[...].astype(compute_dtype)        # (20, 2)
    y_t = jax.lax.dot_general(
        w2, h.astype(compute_dtype),
        dimension_numbers=(((0,), (1,)), ((), ())),
        preferred_element_type=jnp.float32,
    )                                             # (2, TILE_B)
    y_t = y_t + b2_ref[...]                       # (2, 1) broadcast over lanes
    out_ref[...] = jax.nn.sigmoid(y_t).astype(out_ref.dtype)   # exp/recip go to the (idle) EUP


def basic_nn_forward(x, w1, b1, w2, b2, *, tile_b=None, compute_dtype=jnp.float32):
    """x: (B, in_features) f32; returns (B, 2) f32.

    w1: (in_features, hidden), b1: (1, hidden), w2: (hidden, 2), b2: (2, 1).
    """
    B, in_features = x.shape
    hidden = w1.shape[1]
    n_out = w2.shape[1]

    if tile_b is None:
        # Lane-dense output block needs TILE_B to be a multiple of 128.
        # Cap x double-buffering at ~8 MiB so we stay well inside the scoped VMEM limit
        # on every generation (v7x has half the VMEM of v6e).
        bytes_per_row = in_features * 4
        budget_rows = (8 * 1024 * 1024) // (2 * max(bytes_per_row, 1))
        max_tile = max(128, (budget_rows // 128) * 128)
        tile_b = min(max_tile, 1024, 128 * pl.cdiv(B, 128))
    assert tile_b % 128 == 0

    # Pad batch up to a multiple of TILE_B (padded rows are sliced off afterwards).
    b_pad = pl.cdiv(B, tile_b) * tile_b
    if b_pad != B:
        x = jnp.pad(x, ((0, b_pad - B), (0, 0)))
    grid = (b_pad // tile_b,)

    out_t = pl.pallas_call(
        functools.partial(_basic_nn_kernel, compute_dtype=compute_dtype),
        out_shape=jax.ShapeDtypeStruct((n_out, b_pad), jnp.float32),
        grid_spec=pltpu.PrefetchScalarGridSpec(
            num_scalar_prefetch=0,
            grid=grid,
            in_specs=[
                # x: streamed along the batch grid (auto double-buffered).
                pl.BlockSpec((tile_b, in_features), lambda i: (i, 0)),
                # Weights/biases: constant index maps -> VMEM-resident, DMA'd once.
                pl.BlockSpec((in_features, hidden), lambda i: (0, 0)),
                pl.BlockSpec((1, hidden), lambda i: (0, 0)),
                pl.BlockSpec((hidden, n_out), lambda i: (0, 0)),
                pl.BlockSpec((n_out, 1), lambda i: (0, 0)),
            ],
            # Transposed (n_out, TILE_B) output block: last dim is 128-multiple -> unmasked vst.
            out_specs=pl.BlockSpec((n_out, tile_b), lambda i: (0, i)),
        ),
        compiler_params=pltpu.CompilerParams(
            dimension_semantics=("parallel",),   # shard batch steps across v7x's 2 TCs
        ),
    )(x, w1, b1, w2, b2)

    return out_t.T[:B]   # tiny (2, B) transpose back in the wrapper (layout plumbing only)


def init_params(key, in_features, hidden=20, out=2):
    # Deterministic init mimicking nn.Linear's uniform(-1/sqrt(fan_in), 1/sqrt(fan_in)).
    k1, k2, k3, k4 = jax.random.split(key, 4)
    bound1 = 1.0 / jnp.sqrt(in_features)
    bound2 = 1.0 / jnp.sqrt(hidden)
    w1 = jax.random.uniform(k1, (in_features, hidden), jnp.float32, -bound1, bound1)
    b1 = jax.random.uniform(k2, (1, hidden), jnp.float32, -bound1, bound1)
    w2 = jax.random.uniform(k3, (hidden, out), jnp.float32, -bound2, bound2)
    b2 = jax.random.uniform(k4, (out, 1), jnp.float32, -bound2, bound2)
    return w1, b1, w2, b2


def _reference(x, w1, b1, w2, b2):
    return jax.nn.sigmoid(jnp.maximum(x @ w1 + b1, 0.0) @ w2 + b2.T)


if __name__ == "__main__":
    key = jax.random.PRNGKey(0)
    kx, kp, kx2 = jax.random.split(key, 3)

    batch, in_features = 8, 32
    x = jax.random.normal(kx, (batch, in_features), jnp.float32)
    w1, b1, w2, b2 = init_params(kp, in_features)

    # --- f32 path (exact match vs. reference) ---
    out = jax.block_until_ready(basic_nn_forward(x, w1, b1, w2, b2))
    ref = _reference(x, w1, b1, w2, b2)
    assert out.shape == (batch, 2)
    assert jnp.allclose(out, ref, atol=1e-5, rtol=1e-5)

    # --- multi-step grid path (B not a multiple of the tile; weights stay resident) ---
    x_big = jax.random.normal(kx2, (300, in_features), jnp.float32)
    out_big = jax.block_until_ready(basic_nn_forward(x_big, w1, b1, w2, b2, tile_b=128))
    ref_big = _reference(x_big, w1, b1, w2, b2)
    assert out_big.shape == (300, 2)
    assert jnp.allclose(out_big, ref_big, atol=1e-5, rtol=1e-5)

    # --- bf16 matmul-input path (v6e/v7x byte-reduction lever), relaxed tolerance ---
    out_bf16 = jax.block_until_ready(
        basic_nn_forward(x, w1, b1, w2, b2, compute_dtype=jnp.bfloat16))
    assert jnp.allclose(out_bf16, ref, atol=2e-2, rtol=2e-2)

    print("KERNEL_OK")
</pallas_src>

<mosaic_0001>
module attributes {stable_mosaic.version = 11 : i64} {
  func.func @_basic_nn_kernel(%arg0: i32, %arg1: memref<128x32xf32, #tpu.memory_space<vmem>>, %arg2: memref<32x20xf32, #tpu.memory_space<vmem>>, %arg3: memref<1x20xf32, #tpu.memory_space<vmem>>, %arg4: memref<20x2xf32, #tpu.memory_space<vmem>>, %arg5: memref<2x1xf32, #tpu.memory_space<vmem>>, %arg6: memref<2x128xf32, #tpu.memory_space<vmem>>) attributes {dimension_semantics = [#tpu.dimension_semantics<parallel>], iteration_bounds = array<i64: 1>, scalar_prefetch = 0 : i64, scratch_operands = 0 : i64, tpu.core_type = #tpu.core_type<tc>, window_params = [{transform_indices = @transform_0, window_bounds = array<i64: 128, 32>}, {pipeline_mode = #tpu.pipeline_mode<synchronous>, transform_indices = @transform_1, window_bounds = array<i64: 32, 20>}, {pipeline_mode = #tpu.pipeline_mode<synchronous>, transform_indices = @transform_2, window_bounds = array<i64: 1, 20>}, {pipeline_mode = #tpu.pipeline_mode<synchronous>, transform_indices = @transform_3, window_bounds = array<i64: 20, 2>}, {pipeline_mode = #tpu.pipeline_mode<synchronous>, transform_indices = @transform_4, window_bounds = array<i64: 2, 1>}, {transform_indices = @transform_5, window_bounds = array<i64: 2, 128>}]} {
    %c0 = arith.constant 0 : index
    %c0_0 = arith.constant 0 : index
    %0 = vector.load %arg1[%c0, %c0_0] : memref<128x32xf32, #tpu.memory_space<vmem>>, vector<128x32xf32>
    %c0_1 = arith.constant 0 : index
    %c0_2 = arith.constant 0 : index
    %1 = vector.load %arg2[%c0_1, %c0_2] : memref<32x20xf32, #tpu.memory_space<vmem>>, vector<32x20xf32>
    %cst = arith.constant dense<0.000000e+00> : vector<128x20xf32>
    %2 = tpu.matmul %0, %1, %cst {dimension_numbers = #tpu.dot_dimension_numbers<[1], [0], [0], [1], [0, 0, 1, 1], [], []>} : vector<128x32xf32>, vector<32x20xf32>, vector<128x20xf32> -> vector<128x20xf32>
    %c0_3 = arith.constant 0 : index
    %c0_4 = arith.constant 0 : index
    %3 = vector.load %arg3[%c0_3, %c0_4] : memref<1x20xf32, #tpu.memory_space<vmem>>, vector<1x20xf32>
    %4 = vector.broadcast %3 : vector<1x20xf32> to vector<128x20xf32>
    %5 = arith.addf %2, %4 : vector<128x20xf32>
    %cst_5 = arith.constant 0.000000e+00 : f32
    %6 = vector.broadcast %cst_5 : f32 to vector<128x20xf32>
    %7 = arith.maximumf %5, %6 : vector<128x20xf32>
    %c0_6 = arith.constant 0 : index
    %c0_7 = arith.constant 0 : index
    %8 = vector.load %arg4[%c0_6, %c0_7] : memref<20x2xf32, #tpu.memory_space<vmem>>, vector<20x2xf32>
    %cst_8 = arith.constant dense<0.000000e+00> : vector<2x128xf32>
    %9 = tpu.matmul %8, %7, %cst_8 {dimension_numbers = #tpu.dot_dimension_numbers<[0], [1], [1], [0], [0, 1, 1, 0], [], []>} : vector<20x2xf32>, vector<128x20xf32>, vector<2x128xf32> -> vector<2x128xf32>
    %c0_9 = arith.constant 0 : index
    %c0_10 = arith.constant 0 : index
    %10 = vector.load %arg5[%c0_9, %c0_10] : memref<2x1xf32, #tpu.memory_space<vmem>>, vector<2x1xf32>
    %11 = vector.broadcast %10 : vector<2x1xf32> to vector<2x128xf32>
    %12 = arith.addf %9, %11 : vector<2x128xf32>
    %13 = arith.negf %12 : vector<2x128xf32>
    %14 = math.exp %13 : vector<2x128xf32>
    %cst_11 = arith.constant 1.000000e+00 : f32
    %15 = vector.broadcast %cst_11 : f32 to vector<2x128xf32>
    %16 = arith.addf %15, %14 : vector<2x128xf32>
    %17 = arith.divf %15, %16 : vector<2x128xf32>
    %c0_12 = arith.constant 0 : index
    %c0_13 = arith.constant 0 : index
    %18 = vector.load %arg6[%c0_12, %c0_13] : memref<2x128xf32, #tpu.memory_space<vmem>>, vector<2x128xf32>
    tpu.vector_store %arg6[%c0_12, %c0_13], %17 {strides = array<i32>} : memref<2x128xf32, #tpu.memory_space<vmem>>, vector<2x128xf32>,
    return
  }
  func.func @transform_0(%arg0: i32) -> (i32, i32) {
    %c0_i32 = arith.constant 0 : i32
    %c0_i32_0 = arith.constant 0 : i32
    return %arg0, %c0_i32 : i32, i32
  }
  func.func @transform_1(%arg0: i32) -> (i32, i32) {
    %c0_i32 = arith.constant 0 : i32
    %c0_i32_0 = arith.constant 0 : i32
    %c0_i32_1 = arith.constant 0 : i32
    return %c0_i32, %c0_i32_0 : i32, i32
  }
  func.func @transform_2(%arg0: i32) -> (i32, i32) {
    %c0_i32 = arith.constant 0 : i32
    %c0_i32_0 = arith.constant 0 : i32
    %c0_i32_1 = arith.constant 0 : i32
    return %c0_i32, %c0_i32_0 : i32, i32
  }
  func.func @transform_3(%arg0: i32) -> (i32, i32) {
    %c0_i32 = arith.constant 0 : i32
    %c0_i32_0 = arith.constant 0 : i32
    %c0_i32_1 = arith.constant 0 : i32
    return %c0_i32, %c0_i32_0 : i32, i32
  }
  func.func @transform_4(%arg0: i32) -> (i32, i32) {
    %c0_i32 = arith.constant 0 : i32
    %c0_i32_0 = arith.constant 0 : i32
    %c0_i32_1 = arith.constant 0 : i32
    return %c0_i32, %c0_i32_0 : i32, i32
  }
  func.func @transform_5(%arg0: i32) -> (i32, i32) {
    %c0_i32 = arith.constant 0 : i32
    %c0_i32_0 = arith.constant 0 : i32
    return %c0_i32, %arg0 : i32, i32
  }
}

</mosaic_0001>

<llo_original>
// kernel: tpu_custom_call.1
$region0: #{tpu_custom_call.1}
  #allocation0 [shape = 'u32[]', space=smem, size = 0x4, offset = 0x4, fixed_abs, tag = 'smem constant byte address 0x4 - core index']
  #allocation1 [shape = 'u32[144,128]{1,0:T(1,128)}', space=vmem, size = 0x12000, scoped, tag = 'internal scratch']
  %s0 = inlined_call_operand.vmem [shape: f32[128,32], index: 0, kind: input, shape index: {}]
  %s1 = inlined_call_operand.vmem [shape: f32[32,20], index: 1, kind: input, shape index: {}]
  %s2 = inlined_call_operand.vmem [shape: f32[1,20], index: 2, kind: input, shape index: {}]
  %s3 = inlined_call_operand.vmem [shape: f32[20,2], index: 3, kind: input, shape index: {}]
  %s4 = inlined_call_operand.vmem [shape: f32[2,1], index: 4, kind: input, shape index: {}]
  %s5 = inlined_call_operand.hbm [shape: f32[2,128], index: 5, kind: output, shape index: {}]
  %s6 = sld [smem:[#allocation0]]
  $region30: #{tpu_custom_call.1} parent=0
    _
  %s8 = ssub.s32 1, %s6
  %s9 = scalar_select 0, %s8, %s6
  $region1: #{tpu_custom_call.1} parent=0
    #allocation2 [shape = 'u8[1024]{0}', space=vmem, size = 0x400, scoped, tag = 'output window, operand 0, single buffered']
    #allocation3 [shape = 's32[1]{0}', space=sflag, size = 0x4, scoped, tag = 'scoped memory for tpu_custom_call.1']
    %10 = vsyncpa [#allocation3], 0
    // Predicated region
    $region2: #{tpu_custom_call.1} parent=1 // pred_check
      _
    $region3: #{tpu_custom_call.1} parent=1 // pred_check_branch
      %12 = sbr.rel (0) target = $region5
    $region4: #{tpu_custom_call.1} parent=1 // pred_region
      _
    $region5: #{tpu_custom_call.1} parent=1 // pred_fallthru
      _
    // Predicated region
    $region6: #{tpu_custom_call.1} parent=1 // pred_check
      _
    $region7: #{tpu_custom_call.1} parent=1 // pred_check_branch
      %14 = sbr.rel (0) target = $region9
    $region8: #{tpu_custom_call.1} parent=1 // pred_region
      _
    $region9: #{tpu_custom_call.1} parent=1 // pred_fallthru
      _
    // Predicated region
    $region10: #{tpu_custom_call.1} parent=1 // pred_check
      _
    $region11: #{tpu_custom_call.1} parent=1 // pred_check_branch
      %16 = sbr.rel (0) target = $region13
    $region12: #{tpu_custom_call.1} parent=1 // pred_region
      _
    $region13: #{tpu_custom_call.1} parent=1 // pred_fallthru
      _
    // Predicated region
    $region14: #{tpu_custom_call.1} parent=1 // pred_check
      _
    $region15: #{tpu_custom_call.1} parent=1 // pred_check_branch
      %18 = sbr.rel (0) target = $region17
    $region16: #{tpu_custom_call.1} parent=1 // pred_region
      _
    $region17: #{tpu_custom_call.1} parent=1 // pred_fallthru
      _
    // Predicated region
    $region18: #{tpu_custom_call.1} parent=1 // pred_check
      _
    $region19: #{tpu_custom_call.1} parent=1 // pred_check_branch
      %20 = sbr.rel (0) target = $region21
    $region20: #{tpu_custom_call.1} parent=1 // pred_region
      _
    $region21: #{tpu_custom_call.1} parent=1 // pred_fallthru
      _
    %v21 = vld [vmem:[%s0] sm:$0xff]
    %v22 = vld [vmem:[%s0 + $0x8] sm:$0xff]
    %v23 = vld [vmem:[%s0 + $0x10] sm:$0xff]
    %v24 = vld [vmem:[%s0 + $0x18] sm:$0xff]
    %v25 = vld [vmem:[%s0 + $0x20] sm:$0xff]
    %v26 = vld [vmem:[%s0 + $0x28] sm:$0xff]
    %v27 = vld [vmem:[%s0 + $0x30] sm:$0xff]
    %v28 = vld [vmem:[%s0 + $0x38] sm:$0xff]
    %v29 = vld [vmem:[%s0 + $0x40] sm:$0xff]
    %v30 = vld [vmem:[%s0 + $0x48] sm:$0xff]
    %v31 = vld [vmem:[%s0 + $0x50] sm:$0xff]
    %v32 = vld [vmem:[%s0 + $0x58] sm:$0xff]
    %v33 = vld [vmem:[%s0 + $0x60] sm:$0xff]
    %v34 = vld [vmem:[%s0 + $0x68] sm:$0xff]
    %v35 = vld [vmem:[%s0 + $0x70] sm:$0xff]
    %v36 = vld [vmem:[%s0 + $0x78] sm:$0xff]
    %v37 = vld [vmem:[%s1] sm:$0xff]
    %v38 = vld [vmem:[%s1 + $0x8] sm:$0xff]
    %v39 = vld [vmem:[%s1 + $0x10] sm:$0xff]
    %v40 = vld [vmem:[%s1 + $0x18] sm:$0xff]
    %v41 = vld [vmem:[%s2] sm:$0x1]
    %v43 = vlaneseq
    %v44 = vshrl.u32 %v43, 7
    %v45 = vsub.s32 0, %v44
    %v46 = vrot.slane %v41, %v45
    %vm48 = vcmask 261120
    %v50 = vsel %vm48, %v21, 0
    %v53 = vsel %vm48, %v22, 0
    %v56 = vsel %vm48, %v23, 0
    %v59 = vsel %vm48, %v24, 0
    %v62 = vsel %vm48, %v25, 0
    %v65 = vsel %vm48, %v26, 0
    %v68 = vsel %vm48, %v27, 0
    %v71 = vsel %vm48, %v28, 0
    %v74 = vsel %vm48, %v29, 0
    %v77 = vsel %vm48, %v30, 0
    %v80 = vsel %vm48, %v31, 0
    %v83 = vsel %vm48, %v32, 0
    %v86 = vsel %vm48, %v33, 0
    %v89 = vsel %vm48, %v34, 0
    %v92 = vsel %vm48, %v35, 0
    %v95 = vsel %vm48, %v36, 0
    %97 = vmatprep.subr.mxu0 0.0
    %98 = vmatpush1.msra.mxu0 %v37
    %99 = vmatprep.subr.mxu0 0.0
    %100 = vmatpush1.msra.mxu0 %v38
    %101 = vmatprep.subr.mxu0 0.0
    %102 = vmatpush1.msra.mxu0 %v39
    %103 = vmatprep.subr.mxu0 0.0
    %104 = vmatpush1.msra.mxu0 %v40
    %105 = vmatprep.subr.mxu0 0.0
    %106 = vmatpush1.msra.mxu0 0.0
    %107 = vmatprep.subr.mxu0 0.0
    %108 = vmatpush1.msra.mxu0 0.0
    %109 = vmatprep.subr.mxu0 0.0
    %110 = vmatpush1.msra.mxu0 0.0
    %111 = vmatprep.subr.mxu0 0.0
    %112 = vmatpush1.msra.mxu0 0.0
    %113 = vmatprep.subr.mxu0 0.0
    %114 = vmatpush1.msra.mxu0 0.0
    %115 = vmatprep.subr.mxu0 0.0
    %116 = vmatpush1.msra.mxu0 0.0
    %117 = vmatprep.subr.mxu0 0.0
    %118 = vmatpush1.msra.mxu0 0.0
    %119 = vmatprep.subr.mxu0 0.0
    %120 = vmatpush1.msra.mxu0 0.0
    %121 = vmatprep.subr.mxu0 0.0
    %122 = vmatpush1.msra.mxu0 0.0
    %123 = vmatprep.subr.mxu0 0.0
    %124 = vmatpush1.msra.mxu0 0.0
    %125 = vmatprep.subr.mxu0 0.0
    %126 = vmatpush1.msra.mxu0 0.0
    %127 = vmatprep.subr.mxu0 0.0
    %128 = vmatpush1.msra.mxu0 0.0
    %129 = vmatprep.subr.mxu0 0.0
    %130 = vmatpush1.msra.mxu0 0.0
    %131 = vmatprep.subr.mxu0 0.0
    %132 = vmatpush1.msra.mxu0 0.0
    %133 = vmatprep.subr.mxu0 0.0
    %134 = vmatpush1.msra.mxu0 0.0
    %135 = vmatprep.subr.mxu0 0.0
    %136 = vmatpush1.msra.mxu0 0.0
    %137 = vmatprep.subr.mxu0 0.0
    %138 = vmatpush1.msra.mxu0 0.0
    %139 = vmatprep.subr.mxu0 0.0
    %140 = vmatpush1.msra.mxu0 0.0
    %141 = vmatprep.subr.mxu0 0.0
    %142 = vmatpush1.msra.mxu0 0.0
    %143 = vmatprep.subr.mxu0 0.0
    %144 = vmatpush1.msra.mxu0 0.0
    %145 = vmatprep.subr.mxu0 0.0
    %146 = vmatpush1.msra.mxu0 0.0
    %147 = vmatprep.subr.mxu0 0.0
    %148 = vmatpush1.msra.mxu0 0.0
    %149 = vmatprep.subr.mxu0 0.0
    %150 = vmatpush1.msra.mxu0 0.0
    %151 = vmatprep.subr.mxu0 0.0
    %152 = vmatpush1.msra.mxu0 0.0
    %153 = vmatprep.subr.mxu0 0.0
    %154 = vmatpush1.msra.mxu0 0.0
    %155 = vmatprep.subr.mxu0 0.0
    %156 = vmatpush1.msra.mxu0 0.0
    %157 = vmatprep.subr.mxu0 0.0
    %158 = vmatpush1.msra.mxu0 0.0
    %159 = vmatprep.subr.mxu0 0.0
    %160 = vmatpush1.msra.mxu0 0.0
    %161 = vmatprep.mubr.f32.mxu0 0.0
    %162 = vmatmul.mubr.f32.gmra.mrb[0].mxu0 %v50
    %v163 = vpop.f32.mrb[0].mxu0
    %v164 = vadd.f32 %v46, %v163
    %v165 = vpop.f32.mrb[0].mxu0
    %166 = vmatprep.mubr.f32.mxu0 0.0
    %167 = vmatmul.mubr.f32.gmra.mrb[0].mxu0 %v53
    %v168 = vpop.f32.mrb[0].mxu0
    %v169 = vadd.f32 %v46, %v168
    %v170 = vpop.f32.mrb[0].mxu0
    %171 = vmatprep.mubr.f32.mxu0 0.0
    %172 = vmatmul.mubr.f32.gmra.mrb[0].mxu0 %v56
    %v173 = vpop.f32.mrb[0].mxu0
    %v174 = vadd.f32 %v46, %v173
    %v175 = vpop.f32.mrb[0].mxu0
    %176 = vmatprep.mubr.f32.mxu0 0.0
    %177 = vmatmul.mubr.f32.gmra.mrb[0].mxu0 %v59
    %v178 = vpop.f32.mrb[0].mxu0
    %v179 = vadd.f32 %v46, %v178
    %v180 = vpop.f32.mrb[0].mxu0
    %181 = vmatprep.mubr.f32.mxu0 0.0
    %182 = vmatmul.mubr.f32.gmra.mrb[0].mxu0 %v62
    %v183 = vpop.f32.mrb[0].mxu0
    %v184 = vadd.f32 %v46, %v183
    %v185 = vpop.f32.mrb[0].mxu0
    %186 = vmatprep.mubr.f32.mxu0 0.0
    %187 = vmatmul.mubr.f32.gmra.mrb[0].mxu0 %v65
    %v188 = vpop.f32.mrb[0].mxu0
    %v189 = vadd.f32 %v46, %v188
    %v190 = vpop.f32.mrb[0].mxu0
    %191 = vmatprep.mubr.f32.mxu0 0.0
    %192 = vmatmul.mubr.f32.gmra.mrb[0].mxu0 %v68
    %v193 = vpop.f32.mrb[0].mxu0
    %v194 = vadd.f32 %v46, %v193
    %v195 = vpop.f32.mrb[0].mxu0
    %196 = vmatprep.mubr.f32.mxu0 0.0
    %197 = vmatmul.mubr.f32.gmra.mrb[0].mxu0 %v71
    %v198 = vpop.f32.mrb[0].mxu0
    %v199 = vadd.f32 %v46, %v198
    %v200 = vpop.f32.mrb[0].mxu0
    %201 = vmatprep.mubr.f32.mxu0 0.0
    %202 = vmatmul.mubr.f32.gmra.mrb[0].mxu0 %v74
    %v203 = vpop.f32.mrb[0].mxu0
    %v204 = vadd.f32 %v46, %v203
    %v205 = vpop.f32.mrb[0].mxu0
    %206 = vmatprep.mubr.f32.mxu0 0.0
    %207 = vmatmul.mubr.f32.gmra.mrb[0].mxu0 %v77
    %v208 = vpop.f32.mrb[0].mxu0
    %v209 = vadd.f32 %v46, %v208
    %v210 = vpop.f32.mrb[0].mxu0
    %211 = vmatprep.mubr.f32.mxu0 0.0
    %212 = vmatmul.mubr.f32.gmra.mrb[0].mxu0 %v80
    %v213 = vpop.f32.mrb[0].mxu0
    %v214 = vadd.f32 %v46, %v213
    %v215 = vpop.f32.mrb[0].mxu0
    %216 = vmatprep.mubr.f32.mxu0 0.0
    %217 = vmatmul.mubr.f32.gmra.mrb[0].mxu0 %v83
    %v218 = vpop.f32.mrb[0].mxu0
    %v219 = vadd.f32 %v46, %v218
    %v220 = vpop.f32.mrb[0].mxu0
    %221 = vmatprep.mubr.f32.mxu0 0.0
    %222 = vmatmul.mubr.f32.gmra.mrb[0].mxu0 %v86
    %v223 = vpop.f32.mrb[0].mxu0
    %v224 = vadd.f32 %v46, %v223
    %v225 = vpop.f32.mrb[0].mxu0
    %226 = vmatprep.mubr.f32.mxu0 0.0
    %227 = vmatmul.mubr.f32.gmra.mrb[0].mxu0 %v89
    %v228 = vpop.f32.mrb[0].mxu0
    %v229 = vadd.f32 %v46, %v228
    %v230 = vpop.f32.mrb[0].mxu0
    %231 = vmatprep.mubr.f32.mxu0 0.0
    %232 = vmatmul.mubr.f32.gmra.mrb[0].mxu0 %v92
    %v233 = vpop.f32.mrb[0].mxu0
    %v234 = vadd.f32 %v46, %v233
    %v235 = vpop.f32.mrb[0].mxu0
    %236 = vmatprep.mubr.f32.mxu0 0.0
    %237 = vmatmul.mubr.f32.gmra.mrb[0].mxu0 %v95
    %v238 = vpop.f32.mrb[0].mxu0
    %v239 = vadd.f32 %v46, %v238
    %v240 = vpop.f32.mrb[0].mxu0
    %241 = vdwg.mxu0
    %v242 = vmax.f32 %v164, 0.0
    %v243 = vmax.f32 %v169, 0.0
    %v244 = vmax.f32 %v174, 0.0
    %v245 = vmax.f32 %v179, 0.0
    %v246 = vmax.f32 %v184, 0.0
    %v247 = vmax.f32 %v189, 0.0
    %v248 = vmax.f32 %v194, 0.0
    %v249 = vmax.f32 %v199, 0.0
    %v250 = vmax.f32 %v204, 0.0
    %v251 = vmax.f32 %v209, 0.0
    %v252 = vmax.f32 %v214, 0.0
    %v253 = vmax.f32 %v219, 0.0
    %v254 = vmax.f32 %v224, 0.0
    %v255 = vmax.f32 %v229, 0.0
    %v256 = vmax.f32 %v234, 0.0
    %v257 = vmax.f32 %v239, 0.0
    %v258 = vld [vmem:[%s3] sm:$0xff]
    %v259 = vld [vmem:[%s3 + $0x8] sm:$0xff]
    %v260 = vld [vmem:[%s3 + $0x10] sm:$0xf]
    %v261 = vld [vmem:[%s4] sm:$0x3]
    %263 = vset.pattern.permute.xlu0 0
    %264 = vperm.xlu0 %263, %v261
    %v265 = vpop.permute.xlu0 %264
    %267 = vxpose.xlu0.b32.start [1/16] %v258, 128
    %268 = vxpose.xlu0.b32.cont [2/16] %v259, 128
    %269 = vxpose.xlu0.b32.cont [3/16] %v260, 128
    %270 = vxpose.xlu0.b32.cont [4/16] 0.0, 128
    %271 = vxpose.xlu0.b32.cont [5/16] 0.0, 128
    %272 = vxpose.xlu0.b32.cont [6/16] 0.0, 128
    %273 = vxpose.xlu0.b32.cont [7/16] 0.0, 128
    %274 = vxpose.xlu0.b32.cont [8/16] 0.0, 128
    %275 = vxpose.xlu0.b32.cont [9/16] 0.0, 128
    %276 = vxpose.xlu0.b32.cont [10/16] 0.0, 128
    %277 = vxpose.xlu0.b32.cont [11/16] 0.0, 128
    %278 = vxpose.xlu0.b32.cont [12/16] 0.0, 128
    %279 = vxpose.xlu0.b32.cont [13/16] 0.0, 128
    %280 = vxpose.xlu0.b32.cont [14/16] 0.0, 128
    %281 = vxpose.xlu0.b32.cont [15/16] 0.0, 128
    %282 = vxpose.xlu0.b32.end [16/16] 0.0, 128
    %v283 = vpop.trf.xlu0
    %v284 = vpop.trf.xlu0
    %v285 = vpop.trf.xlu0
    %v286 = vpop.trf.xlu0
    %v287 = vpop.trf.xlu0
    %v288 = vpop.trf.xlu0
    %v289 = vpop.trf.xlu0
    %v290 = vpop.trf.xlu0
    %v291 = vpop.trf.xlu0
    %v292 = vpop.trf.xlu0
    %v293 = vpop.trf.xlu0
    %v294 = vpop.trf.xlu0
    %v295 = vpop.trf.xlu0
    %v296 = vpop.trf.xlu0
    %v297 = vpop.trf.xlu0
    %v298 = vpop.trf.xlu0
    %vm299 = vcmask 162816
    %v301 = vsel %vm299, %v283, 0
    %v304 = vsel %vm299, %v242, 0
    %v307 = vsel %vm299, %v243, 0
    %v310 = vsel %vm299, %v244, 0
    %v313 = vsel %vm299, %v245, 0
    %v316 = vsel %vm299, %v246, 0
    %v319 = vsel %vm299, %v247, 0
    %v322 = vsel %vm299, %v248, 0
    %v325 = vsel %vm299, %v249, 0
    %v328 = vsel %vm299, %v250, 0
    %v331 = vsel %vm299, %v251, 0
    %v334 = vsel %vm299, %v252, 0
    %v337 = vsel %vm299, %v253, 0
    %v340 = vsel %vm299, %v254, 0
    %v343 = vsel %vm299, %v255, 0
    %v346 = vsel %vm299, %v256, 0
    %v349 = vsel %vm299, %v257, 0
    %351 = vmatprep.subr.mxu0 0.0
    %352 = vmatpush1.xpose.msra.mxu0 %v304
    %353 = vmatprep.subr.mxu0 0.0
    %354 = vmatpush1.xpose.msra.mxu0 %v307
    %355 = vmatprep.subr.mxu0 0.0
    %356 = vmatpush1.xpose.msra.mxu0 %v310
    %357 = vmatprep.subr.mxu0 0.0
    %358 = vmatpush1.xpose.msra.mxu0 %v313
    %359 = vmatprep.subr.mxu0 0.0
    %360 = vmatpush1.xpose.msra.mxu0 %v316
    %361 = vmatprep.subr.mxu0 0.0
    %362 = vmatpush1.xpose.msra.mxu0 %v319
    %363 = vmatprep.subr.mxu0 0.0
    %364 = vmatpush1.xpose.msra.mxu0 %v322
    %365 = vmatprep.subr.mxu0 0.0
    %366 = vmatpush1.xpose.msra.mxu0 %v325
    %367 = vmatprep.subr.mxu0 0.0
    %368 = vmatpush1.xpose.msra.mxu0 %v328
    %369 = vmatprep.subr.mxu0 0.0
    %370 = vmatpush1.xpose.msra.mxu0 %v331
    %371 = vmatprep.subr.mxu0 0.0
    %372 = vmatpush1.xpose.msra.mxu0 %v334
    %373 = vmatprep.subr.mxu0 0.0
    %374 = vmatpush1.xpose.msra.mxu0 %v337
    %375 = vmatprep.subr.mxu0 0.0
    %376 = vmatpush1.xpose.msra.mxu0 %v340
    %377 = vmatprep.subr.mxu0 0.0
    %378 = vmatpush1.xpose.msra.mxu0 %v343
    %379 = vmatprep.subr.mxu0 0.0
    %380 = vmatpush1.xpose.msra.mxu0 %v346
    %381 = vmatprep.subr.mxu0 0.0
    %382 = vmatpush1.xpose.msra.mxu0 %v349
    %383 = vmatprep.subr.mxu0 0.0
    %384 = vmatpush1.xpose.msra.mxu0 0.0
    %385 = vmatprep.subr.mxu0 0.0
    %386 = vmatpush1.xpose.msra.mxu0 0.0
    %387 = vmatprep.subr.mxu0 0.0
    %388 = vmatpush1.xpose.msra.mxu0 0.0
    %389 = vmatprep.subr.mxu0 0.0
    %390 = vmatpush1.xpose.msra.mxu0 0.0
    %391 = vmatprep.subr.mxu0 0.0
    %392 = vmatpush1.xpose.msra.mxu0 0.0
    %393 = vmatprep.subr.mxu0 0.0
    %394 = vmatpush1.xpose.msra.mxu0 0.0
    %395 = vmatprep.subr.mxu0 0.0
    %396 = vmatpush1.xpose.msra.mxu0 0.0
    %397 = vmatprep.subr.mxu0 0.0
    %398 = vmatpush1.xpose.msra.mxu0 0.0
    %399 = vmatprep.subr.mxu0 0.0
    %400 = vmatpush1.xpose.msra.mxu0 0.0
    %401 = vmatprep.subr.mxu0 0.0
    %402 = vmatpush1.xpose.msra.mxu0 0.0
    %403 = vmatprep.subr.mxu0 0.0
    %404 = vmatpush1.xpose.msra.mxu0 0.0
    %405 = vmatprep.subr.mxu0 0.0
    %406 = vmatpush1.xpose.msra.mxu0 0.0
    %407 = vmatprep.subr.mxu0 0.0
    %408 = vmatpush1.xpose.msra.mxu0 0.0
    %409 = vmatprep.subr.mxu0 0.0
    %410 = vmatpush1.xpose.msra.mxu0 0.0
    %411 = vmatprep.subr.mxu0 0.0
    %412 = vmatpush1.xpose.msra.mxu0 0.0
    %413 = vmatprep.subr.mxu0 0.0
    %414 = vmatpush1.xpose.msra.mxu0 0.0
    %415 = vmatprep.mubr.f32.mxu0 0.0
    %416 = vmatmul.mubr.f32.gmra.mrb[0].mxu0 %v301
    %v417 = vpop.f32.mrb[0].mxu0
    %v418 = vadd.f32 %v265, %v417
    %v419 = vpop.f32.mrb[0].mxu0
    %420 = vdwg.mxu0
    %v421 = vxor.u32 %v418, 2147483648
    %v422 = vmul.f32 %v421, 1.442695
    %v423 = vpow.pop %v422
    %v424 = vadd.f32 %v423, 1.0
    %v425 = vrcp.pop %v424
    %v426 = vmul.f32 1.0, %v425
    %427 = vst [vmem:[#allocation2] sm:$0x3] %v426
    // Predicated region
    $region22: #{tpu_custom_call.1} parent=1 // pred_check
      _
    $region23: #{tpu_custom_call.1} parent=1 // pred_check_branch
      %429 = sbr.rel (0) target = $region25
    $region24: #{tpu_custom_call.1} parent=1 // pred_region
      %s431 = ssub.s32 32, 32
      %432 = vsyncadd [#allocation3], %s431
      %s434 = sshll.u32 [#allocation2], 4
      %s435 = int_to_ptr.vmem [resolvable:$true] %s434
      %437 = dma.vmem_to_hbm [thread:$0]  %s435, 32, %s5, [#allocation3]
    $region25: #{tpu_custom_call.1} parent=1 // pred_fallthru
      _
    // Predicated region
    $region26: #{tpu_custom_call.1} parent=1 // pred_check
      _
    $region27: #{tpu_custom_call.1} parent=1 // pred_check_branch
      %439 = sbr.rel (0) target = $region29
    $region28: #{tpu_custom_call.1} parent=1 // pred_region
      %440 = dma.done [#allocation3], 32
    $region29: #{tpu_custom_call.1} parent=1 // pred_fallthru
      _
    %441 = vsyncpa [#allocation3], 1

</llo_original>
